<compile_context>
chip_gen: v7x
topology: tpu7x:2x2x1
jax: 0.10.0
libtpu: 0.0.40
codegen_flags: <defaults>
</compile_context>

<pallas_src>
import functools

import jax
import jax.numpy as jnp
from jax.experimental import pallas as pl
from jax.experimental.pallas import tpu as pltpu

LAMBDA_1 = 0.1
LAMBDA_2 = 0.01


def _round_up(x, m):
    return -(-x // m) * m


def _vmem_capacity_bytes():
    """Physical per-core VMEM; conservative 64 MiB (v7x) fallback if unknown."""
    try:
        info = pltpu.get_tpu_info()
        cap = getattr(info, "vmem_capacity_bytes", None)
        if cap:
            return int(cap)
    except Exception:
        pass
    return 64 * 1024 * 1024


def _padded_row_bytes(c, s, sa):
    """f32 VMEM bytes per batch row across all four operand tiles, including
    lane/sublane padding: logits (blk, C), target (blk, 1) -> 128 lanes,
    alpha (blk, S*A), beta^T (S, blk) -> round_up(S, 8) sublanes."""
    return 4 * (_round_up(c, 128) + 128 + _round_up(sa, 128) + _round_up(s, 8))


def _pick_block_b(batch, per_row_bytes, tile_budget_bytes):
    """Rows per block: as many as the depth-2 double-buffered budget allows,
    multiple of 128 (beta^T lane dim), capped at ~batch/2 so a 2-TensorCore chip
    can split the parallel grid axis."""
    if batch <= 128:
        return batch
    fit = max(128, ((tile_budget_bytes // (2 * per_row_bytes)) // 128) * 128)
    half = max(128, _round_up((batch + 1) // 2, 128))
    return min(fit, half)


def _st_attention_loss_kernel(logits_ref, target_ref, alpha_ref, beta_t_ref,
                              out_ref, *, lambda_1, lambda_2, batch_size,
                              block_b):
    base = pl.program_id(0) * block_b

    logits = logits_ref[...].astype(jnp.float32)                  # (TB, C)
    tb, c = logits.shape

    # Row-validity mask for the (possibly ragged / padded) tail block.
    row_ids = base + jax.lax.broadcasted_iota(jnp.int32, (tb, 1), 0)
    row_valid = row_ids < batch_size                              # (TB, 1)

    # ---- cross entropy per row (numerically stable) ----
    m = jnp.max(logits, axis=1, keepdims=True)                    # (TB, 1)
    lse = jnp.log(jnp.sum(jnp.exp(logits - m), axis=1, keepdims=True)) + m
    cls_iota = jax.lax.broadcasted_iota(jnp.int32, (tb, c), 1)
    onehot = (cls_iota == target_ref[...]).astype(jnp.float32)    # (TB, C)
    picked = jnp.sum(onehot * logits, axis=1, keepdims=True)      # (TB, 1)
    # jnp.where is a select: garbage/NaN in padded rows is dropped, not scaled.
    ce_sum = jnp.sum(jnp.where(row_valid, lse - picked, 0.0))

    # ---- alpha: only its masked grand sum is needed.  Reduce sublane-first
    # (VALU adds), then one small cross-lane reduce per block. ----
    alpha = alpha_ref[...].astype(jnp.float32)                    # (TB, S*A)
    alpha = jnp.where(row_valid, alpha, 0.0)
    alpha_sum = jnp.sum(jnp.sum(alpha, axis=0, keepdims=True))

    # ---- beta (transposed, (S, TB)): per-row L2 norm computed lane-parallel ----
    beta = beta_t_ref[...].astype(jnp.float32)                    # (S, TB)
    col_ids = base + jax.lax.broadcasted_iota(jnp.int32, (1, tb), 1)
    col_valid = col_ids < batch_size                              # (1, TB)
    norm = jnp.sqrt(jnp.sum(beta * beta, axis=0, keepdims=True))  # (1, TB)
    beta_sum = jnp.sum(jnp.where(col_valid, norm, 0.0))

    partial = ce_sum - lambda_1 * alpha_sum + lambda_2 * beta_sum
    out_ref[...] = jnp.full((1, 1, 1), partial, dtype=out_ref.dtype)


def st_attention_loss(inputs, target, alpha, beta,
                      lambda_1=LAMBDA_1, lambda_2=LAMBDA_2, block_b=None):
    """inputs: (B, C); target: (B,) int; alpha: (B, S, A); beta: (B, S, 1)."""
    b, c = inputs.shape
    _, s, a = alpha.shape
    sa = s * a

    target2d = target.astype(jnp.int32).reshape(b, 1)             # (B, 1)
    alpha2d = alpha.reshape(b, sa)                                # (B, S*A) lane-dense
    beta_t = jnp.transpose(jnp.squeeze(beta, axis=-1))            # (S, B) lane-dense

    per_row = _padded_row_bytes(c, s, sa)
    cap = _vmem_capacity_bytes()
    # Generation-aware scoped-VMEM limit; ~70% of it goes to the double-buffered
    # input tiles, the rest is headroom for outputs / internal scratch.
    vmem_limit = (64 << 20) if cap >= (96 << 20) else (40 << 20)
    if block_b is None:
        block_b = _pick_block_b(b, per_row, int(vmem_limit * 0.70))
    # Safety for very wide rows (huge class counts): grow the scoped limit so the
    # minimum 128-row tile still fits, but stay under ~90% of physical VMEM.
    vmem_limit = max(vmem_limit,
                     min(int(cap * 0.9), 2 * block_b * per_row + (8 << 20)))

    nblocks = pl.cdiv(b, block_b)

    kernel = functools.partial(
        _st_attention_loss_kernel,
        lambda_1=float(lambda_1), lambda_2=float(lambda_2),
        batch_size=b, block_b=block_b)

    cost = pl.CostEstimate(
        flops=int(2 * b * sa + 8 * b * c + 4 * b * s),
        transcendentals=int(b * c + 2 * b),
        bytes_accessed=int(4 * (b * c + b + b * sa + b * s + nblocks)))

    partials = pl.pallas_call(
        kernel,
        out_shape=jax.ShapeDtypeStruct((nblocks, 1, 1), jnp.float32),
        grid=(nblocks,),
        in_specs=[
            pl.BlockSpec((block_b, c), lambda i: (i, 0)),         # logits
            pl.BlockSpec((block_b, 1), lambda i: (i, 0)),         # target
            pl.BlockSpec((block_b, sa), lambda i: (i, 0)),        # alpha (flat)
            pl.BlockSpec((s, block_b), lambda i: (0, i)),         # beta^T
        ],
        out_specs=pl.BlockSpec((1, 1, 1), lambda i: (i, 0, 0)),   # per-block partial
        compiler_params=pltpu.CompilerParams(
            dimension_semantics=("parallel",),  # blocks independent -> 2 TCs on v7x
            vmem_limit_bytes=int(vmem_limit)),
        cost_estimate=cost,
    )(inputs, target2d, alpha2d, beta_t)

    # Final combine: mean over batch + the lambda_1 * A constant, added once.
    return jnp.sum(partials) / b + lambda_1 * a


def _reference(inputs, target, alpha, beta, lambda_1=LAMBDA_1, lambda_2=LAMBDA_2):
    # pure-JAX reference mirroring the PyTorch forward
    lse = jax.scipy.special.logsumexp(inputs, axis=1)
    picked = jnp.take_along_axis(inputs, target[:, None], axis=1)[:, 0]
    ce = jnp.mean(lse - picked)
    p1 = lambda_1 * jnp.sum(1.0 - jnp.sum(alpha, axis=1), axis=1)
    p2 = lambda_2 * jnp.sqrt(jnp.sum(jnp.abs(beta) ** 2, axis=1))
    p2 = jnp.squeeze(p2, axis=1)
    return ce + jnp.mean(p1) + jnp.mean(p2)


def _make_inputs(key, b, s, c, a):
    k1, k2, k3, k4 = jax.random.split(key, 4)
    inputs = jax.random.normal(k1, (b, c), dtype=jnp.float32)
    target = jax.random.randint(k2, (b,), 0, c, dtype=jnp.int32)
    alpha = jax.nn.softmax(jax.random.normal(k3, (b, s, a), dtype=jnp.float32), axis=1)
    beta = jax.random.normal(k4, (b, s, 1), dtype=jnp.float32)
    return inputs, target, alpha, beta


if __name__ == "__main__":
    key = jax.random.PRNGKey(0)
    k_a, k_b = jax.random.split(key)

    # Case 1: tiny batch -> single whole-batch block, grid (1,).
    B, S, C, A = 4, 8, 16, 196
    inputs, target, alpha, beta = _make_inputs(k_a, B, S, C, A)
    loss = st_attention_loss(inputs, target, alpha, beta)
    jax.block_until_ready(loss)
    ref = _reference(inputs, target, alpha, beta)
    # f32 reductions + the lambda_1 term cancels two ~20-magnitude quantities.
    assert jnp.allclose(loss, ref, rtol=2e-4, atol=2e-4), (loss, ref)

    # Case 2: multi-block parallel grid (block_b=128) with a ragged masked tail.
    B2 = 130
    inputs2, target2, alpha2, beta2 = _make_inputs(k_b, B2, S, C, A)
    loss2 = st_attention_loss(inputs2, target2, alpha2, beta2)
    jax.block_until_ready(loss2)
    ref2 = _reference(inputs2, target2, alpha2, beta2)
    assert jnp.allclose(loss2, ref2, rtol=2e-4, atol=2e-4), (loss2, ref2)

    print("KERNEL_OK")
</pallas_src>

<mosaic_0001>
module attributes {stable_mosaic.version = 11 : i64} {
  func.func @_st_attention_loss_kernel(%arg0: i32, %arg1: memref<4x16xf32, #tpu.memory_space<vmem>>, %arg2: memref<4x1xi32, #tpu.memory_space<vmem>>, %arg3: memref<4x1568xf32, #tpu.memory_space<vmem>>, %arg4: memref<8x4xf32, #tpu.memory_space<vmem>>, %arg5: memref<1x1x1xf32, #tpu.memory_space<vmem>>) attributes {dimension_semantics = [#tpu.dimension_semantics<parallel>], iteration_bounds = array<i64: 1>, scalar_prefetch = 0 : i64, scratch_operands = 0 : i64, tpu.core_type = #tpu.core_type<tc>, window_params = [{transform_indices = @transform_0, window_bounds = array<i64: 4, 16>}, {transform_indices = @transform_1, window_bounds = array<i64: 4, 1>}, {transform_indices = @transform_2, window_bounds = array<i64: 4, 1568>}, {transform_indices = @transform_3, window_bounds = array<i64: 8, 4>}, {transform_indices = @transform_4, window_bounds = array<i64: 1, 1, 1>}]} {
    %c4_i32 = arith.constant 4 : i32
    %0 = arith.muli %arg0, %c4_i32 : i32
    %c0 = arith.constant 0 : index
    %c0_0 = arith.constant 0 : index
    %1 = vector.load %arg1[%c0, %c0_0] : memref<4x16xf32, #tpu.memory_space<vmem>>, vector<4x16xf32>
    %2 = tpu.iota {dimensions = array<i32: 0>} : vector<4x1xi32>
    %3 = vector.broadcast %0 : i32 to vector<4x1xi32>
    %4 = arith.addi %3, %2 : vector<4x1xi32>
    %c4_i32_1 = arith.constant 4 : i32
    %5 = vector.broadcast %c4_i32_1 : i32 to vector<4x1xi32>
    %6 = arith.cmpi slt, %4, %5 : vector<4x1xi32>
    %cst = arith.constant dense<0xFF800000> : vector<4xf32>
    %7 = vector.multi_reduction <maximumf>, %1, %cst [1] : vector<4x16xf32> to vector<4xf32>
    %8 = vector.shape_cast %7 : vector<4xf32> to vector<4x1xf32>
    %9 = vector.broadcast %8 : vector<4x1xf32> to vector<4x16xf32>
    %10 = arith.subf %1, %9 : vector<4x16xf32>
    %11 = math.exp %10 : vector<4x16xf32>
    %cst_2 = arith.constant dense<0.000000e+00> : vector<4xf32>
    %12 = vector.multi_reduction <add>, %11, %cst_2 [1] : vector<4x16xf32> to vector<4xf32>
    %13 = vector.shape_cast %12 : vector<4xf32> to vector<4x1xf32>
    %14 = math.log %13 : vector<4x1xf32>
    %15 = arith.addf %14, %8 : vector<4x1xf32>
    %16 = tpu.iota {dimensions = array<i32: 1>} : vector<4x16xi32>
    %c0_3 = arith.constant 0 : index
    %c0_4 = arith.constant 0 : index
    %17 = vector.load %arg2[%c0_3, %c0_4] : memref<4x1xi32, #tpu.memory_space<vmem>>, vector<4x1xi32>
    %18 = vector.broadcast %17 : vector<4x1xi32> to vector<4x16xi32>
    %19 = arith.cmpi eq, %16, %18 : vector<4x16xi32>
    %20 = arith.extui %19 : vector<4x16xi1> to vector<4x16xi32>
    %21 = arith.sitofp %20 : vector<4x16xi32> to vector<4x16xf32>
    %22 = arith.mulf %21, %1 : vector<4x16xf32>
    %cst_5 = arith.constant dense<0.000000e+00> : vector<4xf32>
    %23 = vector.multi_reduction <add>, %22, %cst_5 [1] : vector<4x16xf32> to vector<4xf32>
    %24 = vector.shape_cast %23 : vector<4xf32> to vector<4x1xf32>
    %25 = arith.subf %15, %24 : vector<4x1xf32>
    %cst_6 = arith.constant 0.000000e+00 : f32
    %26 = vector.broadcast %cst_6 : f32 to vector<4x1xf32>
    %27 = arith.select %6, %25, %26 : vector<4x1xi1>, vector<4x1xf32>
    %28 = vector.shape_cast %27 : vector<4x1xf32> to vector<1x4x1xf32>
    %cst_7 = arith.constant dense<0.000000e+00> : vector<1xf32>
    %29 = vector.multi_reduction <add>, %28, %cst_7 [1, 2] : vector<1x4x1xf32> to vector<1xf32>
    %30 = vector.shape_cast %29 : vector<1xf32> to vector<1x1x1xf32>
    %31 = vector.extract %30[0, 0, 0] : f32 from vector<1x1x1xf32>
    %c0_8 = arith.constant 0 : index
    %c0_9 = arith.constant 0 : index
    %32 = vector.load %arg3[%c0_8, %c0_9] : memref<4x1568xf32, #tpu.memory_space<vmem>>, vector<4x1568xf32>
    %cst_10 = arith.constant 0.000000e+00 : f32
    %33 = vector.shape_cast %6 : vector<4x1xi1> to vector<4x1xi1>
    %34 = vector.broadcast %33 : vector<4x1xi1> to vector<4x1568xi1>
    %35 = vector.broadcast %cst_10 : f32 to vector<4x1568xf32>
    %36 = arith.select %34, %32, %35 : vector<4x1568xi1>, vector<4x1568xf32>
    %cst_11 = arith.constant dense<0.000000e+00> : vector<1568xf32>
    %37 = vector.multi_reduction <add>, %36, %cst_11 [0] : vector<4x1568xf32> to vector<1568xf32>
    %38 = vector.shape_cast %37 : vector<1568xf32> to vector<1x1568xf32>
    %39 = vector.shape_cast %38 : vector<1x1568xf32> to vector<1x1x1568xf32>
    %cst_12 = arith.constant dense<0.000000e+00> : vector<1xf32>
    %40 = vector.multi_reduction <add>, %39, %cst_12 [1, 2] : vector<1x1x1568xf32> to vector<1xf32>
    %41 = vector.shape_cast %40 : vector<1xf32> to vector<1x1x1xf32>
    %42 = vector.extract %41[0, 0, 0] : f32 from vector<1x1x1xf32>
    %c0_13 = arith.constant 0 : index
    %c0_14 = arith.constant 0 : index
    %43 = vector.load %arg4[%c0_13, %c0_14] : memref<8x4xf32, #tpu.memory_space<vmem>>, vector<8x4xf32>
    %44 = tpu.iota {dimensions = array<i32: 1>} : vector<1x4xi32>
    %45 = vector.broadcast %0 : i32 to vector<1x4xi32>
    %46 = arith.addi %45, %44 : vector<1x4xi32>
    %c4_i32_15 = arith.constant 4 : i32
    %47 = vector.broadcast %c4_i32_15 : i32 to vector<1x4xi32>
    %48 = arith.cmpi slt, %46, %47 : vector<1x4xi32>
    %49 = arith.mulf %43, %43 : vector<8x4xf32>
    %cst_16 = arith.constant dense<0.000000e+00> : vector<4xf32>
    %50 = vector.multi_reduction <add>, %49, %cst_16 [0] : vector<8x4xf32> to vector<4xf32>
    %51 = vector.shape_cast %50 : vector<4xf32> to vector<1x4xf32>
    %52 = math.sqrt %51 : vector<1x4xf32>
    %cst_17 = arith.constant 0.000000e+00 : f32
    %53 = vector.broadcast %cst_17 : f32 to vector<1x4xf32>
    %54 = arith.select %48, %52, %53 : vector<1x4xi1>, vector<1x4xf32>
    %55 = vector.shape_cast %54 : vector<1x4xf32> to vector<1x1x4xf32>
    %cst_18 = arith.constant dense<0.000000e+00> : vector<1xf32>
    %56 = vector.multi_reduction <add>, %55, %cst_18 [1, 2] : vector<1x1x4xf32> to vector<1xf32>
    %57 = vector.shape_cast %56 : vector<1xf32> to vector<1x1x1xf32>
    %58 = vector.extract %57[0, 0, 0] : f32 from vector<1x1x1xf32>
    %cst_19 = arith.constant 1.000000e-01 : f32
    %59 = arith.mulf %cst_19, %42 : f32
    %60 = arith.subf %31, %59 : f32
    %cst_20 = arith.constant 0.00999999977 : f32
    %61 = arith.mulf %cst_20, %58 : f32
    %62 = arith.addf %60, %61 : f32
    %63 = vector.broadcast %62 : f32 to vector<1x1x1xf32>
    %c0_21 = arith.constant 0 : index
    %c0_22 = arith.constant 0 : index
    %c0_23 = arith.constant 0 : index
    %64 = vector.load %arg5[%c0_21, %c0_22, %c0_23] : memref<1x1x1xf32, #tpu.memory_space<vmem>>, vector<1x1x1xf32>
    tpu.vector_store %arg5[%c0_21, %c0_22, %c0_23], %63 {strides = array<i32>} : memref<1x1x1xf32, #tpu.memory_space<vmem>>, vector<1x1x1xf32>,
    return
  }
  func.func @transform_0(%arg0: i32) -> (i32, i32) {
    %c0_i32 = arith.constant 0 : i32
    %c0_i32_0 = arith.constant 0 : i32
    return %arg0, %c0_i32 : i32, i32
  }
  func.func @transform_1(%arg0: i32) -> (i32, i32) {
    %c0_i32 = arith.constant 0 : i32
    %c0_i32_0 = arith.constant 0 : i32
    return %arg0, %c0_i32 : i32, i32
  }
  func.func @transform_2(%arg0: i32) -> (i32, i32) {
    %c0_i32 = arith.constant 0 : i32
    %c0_i32_0 = arith.constant 0 : i32
    return %arg0, %c0_i32 : i32, i32
  }
  func.func @transform_3(%arg0: i32) -> (i32, i32) {
    %c0_i32 = arith.constant 0 : i32
    %c0_i32_0 = arith.constant 0 : i32
    return %c0_i32, %arg0 : i32, i32
  }
  func.func @transform_4(%arg0: i32) -> (i32, i32, i32) {
    %c0_i32 = arith.constant 0 : i32
    %c0_i32_0 = arith.constant 0 : i32
    %c0_i32_1 = arith.constant 0 : i32
    return %arg0, %c0_i32, %c0_i32_0 : i32, i32, i32
  }
}

</mosaic_0001>

<llo_original>
// kernel: tpu_custom_call.1
$region0: #{tpu_custom_call.1}
  #allocation0 [shape = 'u32[]', space=smem, size = 0x4, offset = 0x4, fixed_abs, tag = 'smem constant byte address 0x4 - core index']
  #allocation1 [shape = 'u32[144,128]{1,0:T(1,128)}', space=vmem, size = 0x12000, scoped, tag = 'internal scratch']
  %s0 = inlined_call_operand.vmem [shape: f32[4,16], index: 0, kind: input, shape index: {}]
  %s1 = inlined_call_operand.vmem [shape: s32[4,1], index: 1, kind: input, shape index: {}]
  %s2 = inlined_call_operand.hbm [shape: f32[4,1568], index: 2, kind: input, shape index: {}]
  %s3 = inlined_call_operand.vmem [shape: f32[8,4], index: 3, kind: input, shape index: {}]
  %s4 = inlined_call_operand.hbm [shape: f32[1,1,1], index: 4, kind: output, shape index: {}]
  %s5 = sld [smem:[#allocation0]]
  $region30: #{tpu_custom_call.1} parent=0
    _
  %s7 = ssub.s32 1, %s5
  %s8 = scalar_select 0, %s7, %s5
  $region1: #{tpu_custom_call.1} parent=0
    #allocation2 [shape = 'u8[26624]{0}', space=vmem, size = 0x6800, scoped, tag = 'input window, operand 2, single buffered']
    #allocation3 [shape = 's32[1]{0}', space=sflag, size = 0x4, scoped, tag = 'scoped memory for tpu_custom_call.1']
    #allocation4 [shape = 's32[1]{0}', space=sflag, size = 0x4, scoped, tag = 'scoped memory for tpu_custom_call.1']
    #allocation5 [shape = 'u8[512]{0}', space=vmem, size = 0x400, scoped, tag = 'output window, operand 0, single buffered']
    %9 = vsyncpa [#allocation3], 0
    %10 = vsyncpa [#allocation4], 0
    // Predicated region
    $region2: #{tpu_custom_call.1} parent=1 // pred_check
      _
    $region3: #{tpu_custom_call.1} parent=1 // pred_check_branch
      %12 = sbr.rel (0) target = $region5
    $region4: #{tpu_custom_call.1} parent=1 // pred_region
      _
    $region5: #{tpu_custom_call.1} parent=1 // pred_fallthru
      _
    // Predicated region
    $region6: #{tpu_custom_call.1} parent=1 // pred_check
      _
    $region7: #{tpu_custom_call.1} parent=1 // pred_check_branch
      %14 = sbr.rel (0) target = $region9
    $region8: #{tpu_custom_call.1} parent=1 // pred_region
      _
    $region9: #{tpu_custom_call.1} parent=1 // pred_fallthru
      _
    // Predicated region
    $region10: #{tpu_custom_call.1} parent=1 // pred_check
      _
    $region11: #{tpu_custom_call.1} parent=1 // pred_check_branch
      %16 = sbr.rel (0) target = $region13
    $region12: #{tpu_custom_call.1} parent=1 // pred_region
      %s18 = ssub.s32 832, 832
      %19 = vsyncadd [#allocation3], %s18
      %s21 = sshll.u32 [#allocation2], 4
      %s22 = int_to_ptr.vmem [resolvable:$true] %s21
      %24 = dma.hbm_to_vmem [thread:$0]  %s2, 832, %s22, [#allocation3]
    $region13: #{tpu_custom_call.1} parent=1 // pred_fallthru
      _
    // Predicated region
    $region14: #{tpu_custom_call.1} parent=1 // pred_check
      _
    $region15: #{tpu_custom_call.1} parent=1 // pred_check_branch
      %26 = sbr.rel (0) target = $region17
    $region16: #{tpu_custom_call.1} parent=1 // pred_region
      _
    $region17: #{tpu_custom_call.1} parent=1 // pred_fallthru
      _
    // Predicated region
    $region18: #{tpu_custom_call.1} parent=1 // pred_check
      _
    $region19: #{tpu_custom_call.1} parent=1 // pred_check_branch
      %28 = sbr.rel (0) target = $region21
    $region20: #{tpu_custom_call.1} parent=1 // pred_region
      %29 = dma.done [#allocation3], 832
    $region21: #{tpu_custom_call.1} parent=1 // pred_fallthru
      _
    %s30 = smul.u32 0, 4
    %v31 = vld [vmem:[%s0] sm:$0xf]
    %v32 = vlaneseq
    %v33 = vshrl.u32 %v32, 7
    %v34 = vstv %s30
    %v35 = vadd.s32 %v34, %v33
    %vm36 = vcmp.lt.s32.totalorder %v35, 4
    %vm37 = vcmask 125952
    %v38 = vsel %vm37, %v31, -inf
    %39 = vmax.xlane.f32.xlu0 %v38
    %v40 = vpop.xlane.xlu0 %39
    %v41 = vsub.f32 %v31, %v40
    %v42 = vmul.f32 %v41, 1.442695
    %v43 = vpow.pop %v42
    %v44 = vsel %vm37, %v43, 0.0
    %45 = vadd.xlane.f32.xlu0 %v44
    %v46 = vpop.xlane.xlu0 %45
    %v47 = vlog2.pop %v46
    %v48 = vmul.f32 %v47, 0.6931472
    %v49 = vadd.f32 %v48, %v40
    %v50 = vlaneseq
    %v51 = vand.u32 %v50, 127
    %v52 = vld [vmem:[%s1] sm:$0xf]
    %53 = vset.pattern.permute.xlu0 0
    %54 = vperm.xlu0 %53, %v52
    %v55 = vpop.permute.xlu0 %54
    %vm56 = vcmp.eq.s32.totalorder %v51, %v55
    %v57 = vsel %vm56, 1, 0
    %v58 = vcvt.s32.f32 %v57
    %v59 = vmul.f32 %v58, %v31
    %v60 = vsel %vm37, %v59, 0.0
    %61 = vadd.xlane.f32.xlu0 %v60
    %v62 = vpop.xlane.xlu0 %61
    %v63 = vsub.f32 %v49, %v62
    %v64 = vsel %vm36, %v63, 0.0
    %vm65 = vcmask 3072
    %v66 = vsel %vm65, %v64, 0.0
    %67 = vadd.xlane.f32.xlu0 %v66
    %v68 = vpop.xlane.xlu0 %67
    %v69 = vrot.slane %v68, 4
    %v70 = vadd.f32 %v68, %v69
    %v71 = vrot.slane %v70, 2
    %v72 = vadd.f32 %v70, %v71
    %v73 = vrot.slane %v72, 1
    %v74 = vadd.f32 %v72, %v73
    %s75 = vtos %v74
    %v76 = vld [vmem:[#allocation2] sm:$0xff]
    %v77 = vld [vmem:[#allocation2 + $0x8] sm:$0xff]
    %v78 = vld [vmem:[#allocation2 + $0x10] sm:$0xff]
    %v79 = vld [vmem:[#allocation2 + $0x18] sm:$0xff]
    %v80 = vld [vmem:[#allocation2 + $0x20] sm:$0xff]
    %v81 = vld [vmem:[#allocation2 + $0x28] sm:$0xff]
    %v82 = vld [vmem:[#allocation2 + $0x30] sm:$0xf]
    %v83 = vsel %vm36, 1, 0
    %vm84 = vcmp.eq.s32.totalorder %v83, 1
    %v91 = vcombine.high %v76, %v76
    %v92 = vcombine.high %v77, %v77
    %v93 = vcombine.high %v78, %v78
    %v94 = vcombine.high %v79, %v79
    %v95 = vcombine.high %v80, %v80
    %v96 = vcombine.high %v81, %v81
    %v103 = vsel %vm84, %v76, 0.0
    %v104 = vsel %vm84, %v91, 0.0
    %v105 = vsel %vm84, %v77, 0.0
    %v106 = vsel %vm84, %v92, 0.0
    %v107 = vsel %vm84, %v78, 0.0
    %v108 = vsel %vm84, %v93, 0.0
    %v109 = vsel %vm84, %v79, 0.0
    %v110 = vsel %vm84, %v94, 0.0
    %v111 = vsel %vm84, %v80, 0.0
    %v112 = vsel %vm84, %v95, 0.0
    %v113 = vsel %vm84, %v81, 0.0
    %v114 = vsel %vm84, %v96, 0.0
    %v115 = vsel %vm84, %v82, 0.0
    %vm116 = vcmask 1043456
    %v117 = vsel %vm116, %v103, 0.0
    %v118 = vrot.slane %v117, 4
    %v119 = vadd.f32 %v117, %v118
    %v120 = vrot.slane %v119, 2
    %v121 = vadd.f32 %v119, %v120
    %v122 = vrot.slane %v121, 1
    %v123 = vadd.f32 %v121, %v122
    %v124 = vsel %vm116, %v104, 0.0
    %v125 = vrot.slane %v124, 4
    %v126 = vadd.f32 %v124, %v125
    %v127 = vrot.slane %v126, 2
    %v128 = vadd.f32 %v126, %v127
    %v129 = vrot.slane %v128, 1
    %v130 = vadd.f32 %v128, %v129
    %v131 = vsel %vm116, %v105, 0.0
    %v132 = vrot.slane %v131, 4
    %v133 = vadd.f32 %v131, %v132
    %v134 = vrot.slane %v133, 2
    %v135 = vadd.f32 %v133, %v134
    %v136 = vrot.slane %v135, 1
    %v137 = vadd.f32 %v135, %v136
    %v138 = vsel %vm116, %v106, 0.0
    %v139 = vrot.slane %v138, 4
    %v140 = vadd.f32 %v138, %v139
    %v141 = vrot.slane %v140, 2
    %v142 = vadd.f32 %v140, %v141
    %v143 = vrot.slane %v142, 1
    %v144 = vadd.f32 %v142, %v143
    %v145 = vsel %vm116, %v107, 0.0
    %v146 = vrot.slane %v145, 4
    %v147 = vadd.f32 %v145, %v146
    %v148 = vrot.slane %v147, 2
    %v149 = vadd.f32 %v147, %v148
    %v150 = vrot.slane %v149, 1
    %v151 = vadd.f32 %v149, %v150
    %v152 = vsel %vm116, %v108, 0.0
    %v153 = vrot.slane %v152, 4
    %v154 = vadd.f32 %v152, %v153
    %v155 = vrot.slane %v154, 2
    %v156 = vadd.f32 %v154, %v155
    %v157 = vrot.slane %v156, 1
    %v158 = vadd.f32 %v156, %v157
    %v159 = vsel %vm116, %v109, 0.0
    %v160 = vrot.slane %v159, 4
    %v161 = vadd.f32 %v159, %v160
    %v162 = vrot.slane %v161, 2
    %v163 = vadd.f32 %v161, %v162
    %v164 = vrot.slane %v163, 1
    %v165 = vadd.f32 %v163, %v164
    %v166 = vsel %vm116, %v110, 0.0
    %v167 = vrot.slane %v166, 4
    %v168 = vadd.f32 %v166, %v167
    %v169 = vrot.slane %v168, 2
    %v170 = vadd.f32 %v168, %v169
    %v171 = vrot.slane %v170, 1
    %v172 = vadd.f32 %v170, %v171
    %v173 = vsel %vm116, %v111, 0.0
    %v174 = vrot.slane %v173, 4
    %v175 = vadd.f32 %v173, %v174
    %v176 = vrot.slane %v175, 2
    %v177 = vadd.f32 %v175, %v176
    %v178 = vrot.slane %v177, 1
    %v179 = vadd.f32 %v177, %v178
    %v180 = vsel %vm116, %v112, 0.0
    %v181 = vrot.slane %v180, 4
    %v182 = vadd.f32 %v180, %v181
    %v183 = vrot.slane %v182, 2
    %v184 = vadd.f32 %v182, %v183
    %v185 = vrot.slane %v184, 1
    %v186 = vadd.f32 %v184, %v185
    %v187 = vsel %vm116, %v113, 0.0
    %v188 = vrot.slane %v187, 4
    %v189 = vadd.f32 %v187, %v188
    %v190 = vrot.slane %v189, 2
    %v191 = vadd.f32 %v189, %v190
    %v192 = vrot.slane %v191, 1
    %v193 = vadd.f32 %v191, %v192
    %v194 = vsel %vm116, %v114, 0.0
    %v195 = vrot.slane %v194, 4
    %v196 = vadd.f32 %v194, %v195
    %v197 = vrot.slane %v196, 2
    %v198 = vadd.f32 %v196, %v197
    %v199 = vrot.slane %v198, 1
    %v200 = vadd.f32 %v198, %v199
    %vm201 = vcmask 257024
    %v202 = vsel %vm201, %v115, 0.0
    %v203 = vrot.slane %v202, 4
    %v204 = vadd.f32 %v202, %v203
    %v205 = vrot.slane %v204, 2
    %v206 = vadd.f32 %v204, %v205
    %v207 = vrot.slane %v206, 1
    %v208 = vadd.f32 %v206, %v207
    %vm209 = vcmask 1040384
    %v210 = vsel %vm209, %v123, 0.0
    %v211 = vsel %vm209, %v130, 0.0
    %v212 = vadd.f32 %v210, %v211
    %v213 = vsel %vm209, %v137, 0.0
    %v214 = vadd.f32 %v212, %v213
    %v215 = vsel %vm209, %v144, 0.0
    %v216 = vadd.f32 %v214, %v215
    %v217 = vsel %vm209, %v151, 0.0
    %v218 = vadd.f32 %v216, %v217
    %v219 = vsel %vm209, %v158, 0.0
    %v220 = vadd.f32 %v218, %v219
    %v221 = vsel %vm209, %v165, 0.0
    %v222 = vadd.f32 %v220, %v221
    %v223 = vsel %vm209, %v172, 0.0
    %v224 = vadd.f32 %v222, %v223
    %v225 = vsel %vm209, %v179, 0.0
    %v226 = vadd.f32 %v224, %v225
    %v227 = vsel %vm209, %v186, 0.0
    %v228 = vadd.f32 %v226, %v227
    %v229 = vsel %vm209, %v193, 0.0
    %v230 = vadd.f32 %v228, %v229
    %v231 = vsel %vm209, %v200, 0.0
    %v232 = vadd.f32 %v230, %v231
    %vm233 = vcmask 253952
    %v234 = vsel %vm233, %v208, 0.0
    %v235 = vadd.f32 %v232, %v234
    %236 = vadd.xlane.f32.xlu0 %v235
    %v237 = vpop.xlane.xlu0 %236
    %v238 = vrot.slane %v237, 4
    %v239 = vadd.f32 %v237, %v238
    %v240 = vrot.slane %v239, 2
    %v241 = vadd.f32 %v239, %v240
    %v242 = vrot.slane %v241, 1
    %v243 = vadd.f32 %v241, %v242
    %s244 = vtos %v243
    %v245 = vld [vmem:[%s3] sm:$0xff]
    %v246 = vadd.s32 %v34, %v51
    %vm247 = vcmp.lt.s32.totalorder %v246, 4
    %v248 = vmul.f32 %v245, %v245
    %vm249 = vcmask 31744
    %v250 = vsel %vm249, %v248, 0.0
    %v251 = vrot.slane %v250, 4
    %v252 = vadd.f32 %v250, %v251
    %v253 = vrot.slane %v252, 2
    %v254 = vadd.f32 %v252, %v253
    %v255 = vrot.slane %v254, 1
    %v256 = vadd.f32 %v254, %v255
    %v257 = vrsqrt.pop %v256
    %v258 = vmul.f32 %v256, %v257
    %vm259 = vcmp.eq.f32.partialorder %v256, inf
    %v260 = vsel %vm259, %v256, %v258
    %vm261 = vcmp.eq.f32.partialorder %v256, 0.0
    %v262 = vand.u32 %v256, 2147483648
    %v263 = vsel %vm261, %v262, %v260
    %v264 = vsel %vm247, %v263, 0.0
    %vm265 = vcmask 24576
    %v266 = vsel %vm265, %v264, 0.0
    %267 = vadd.xlane.f32.xlu0 %v266
    %v268 = vpop.xlane.xlu0 %267
    %v269 = vrot.slane %v268, 4
    %v270 = vadd.f32 %v268, %v269
    %v271 = vrot.slane %v270, 2
    %v272 = vadd.f32 %v270, %v271
    %v273 = vrot.slane %v272, 1
    %v274 = vadd.f32 %v272, %v273
    %s275 = vtos %v274
    %s276 = smul.f32 %s244, 0.1
    %s277 = ssub.f32 %s75, %s276
    %s278 = smul.f32 %s275, 0.01
    %s279 = sadd.f32 %s277, %s278
    %v280 = vstv %s279
    %vm281 = vcmask 0
    %282 = vst.msk [vmem:[#allocation5] sm:$0x1] %vm281, %v280
    // Predicated region
    $region22: #{tpu_custom_call.1} parent=1 // pred_check
      _
    $region23: #{tpu_custom_call.1} parent=1 // pred_check_branch
      %284 = sbr.rel (0) target = $region25
    $region24: #{tpu_custom_call.1} parent=1 // pred_region
      %s286 = ssub.s32 16, 16
      %287 = vsyncadd [#allocation4], %s286
      %s289 = sshll.u32 [#allocation5], 4
      %s290 = int_to_ptr.vmem [resolvable:$true] %s289
      %292 = dma.vmem_to_hbm [thread:$0]  %s290, 16, %s4, [#allocation4]
    $region25: #{tpu_custom_call.1} parent=1 // pred_fallthru
      _
    // Predicated region
    $region26: #{tpu_custom_call.1} parent=1 // pred_check
      _
    $region27: #{tpu_custom_call.1} parent=1 // pred_check_branch
      %294 = sbr.rel (0) target = $region29
    $region28: #{tpu_custom_call.1} parent=1 // pred_region
      %295 = dma.done [#allocation4], 16
    $region29: #{tpu_custom_call.1} parent=1 // pred_fallthru
      _
    %296 = vsyncpa [#allocation3], 1
    %297 = vsyncpa [#allocation4], 1

</llo_original>
